<compile_context>
chip_gen: v5e
topology: v5e:2x2
jax: 0.10.0
libtpu: 0.0.40
codegen_flags: <defaults>
</compile_context>

<pallas_src>
import jax
import jax.numpy as jnp
from jax.experimental import pallas as pl
from jax.experimental.pallas import tpu as pltpu


def _round_up(a, b):
    return (a + b - 1) // b * b


def param_dist_kernel(x_ref, wt_ref, c_ref, out_ref):
    # x_ref: (tn, d_p)  wt_ref: (d_p, m_p)  c_ref: (1, m_p)  out_ref: (tn, m_p)
    acc = jnp.dot(x_ref[...], wt_ref[...], preferred_element_type=jnp.float32)
    # logits = c - x @ W^T : negation folded into the constant-minus-matmul epilogue.
    out_ref[...] = (c_ref[...] - acc).astype(out_ref.dtype)


def param_dist(x, y, w, *, tn=256, compute_dtype=jnp.float32):
    """logits[i, j] = -sum_k (x[i,k] - y[j,k]) * W[j,k]  ==  c[j] - (x @ W^T)[i,j].

    compute_dtype=jnp.bfloat16 can be used on v6e/v7x for extra MXU throughput
    (accumulation stays f32); default f32 keeps the torch-f32 semantics exactly.
    """
    n, d = x.shape
    m, dw = w.shape
    assert y.shape == (m, d) and dw == d, "W must be (m, d) for the torch broadcast to hold"

    itemsize = jnp.dtype(compute_dtype).itemsize

    # Per-column constant c[j] = sum_k y[j,k] * W[j,k]   (tiny O(m*d) precompute, f32).
    c = jnp.sum(y.astype(jnp.float32) * w.astype(jnp.float32), axis=1)

    # Padded, lane-dense geometry: m (output lanes) and d (matmul K) to multiples
    # of 128; n padded to a multiple of the n-tile.
    m_p = _round_up(m, 128)
    d_p = _round_up(d, 128)
    tn = max(8, min(tn, _round_up(n, 8)))

    # Keep the VMEM footprint bounded (important on v7x's 64 MiB VMEM):
    #   double-buffered x tile + out tile, resident W^T + c.
    def est_vmem(t):
        return (2 * t * d_p * itemsize
                + 2 * t * m_p * 4
                + 2 * d_p * m_p * itemsize
                + 2 * m_p * 4)

    while tn > 8 and est_vmem(tn) > 40 * 1024 * 1024:
        tn = max(8, _round_up(tn // 2, 8))
    n_p = _round_up(n, tn)

    x_p = jnp.zeros((n_p, d_p), compute_dtype).at[:n, :d].set(x.astype(compute_dtype))
    wt_p = jnp.zeros((d_p, m_p), compute_dtype).at[:d, :m].set(w.T.astype(compute_dtype))
    c_p = jnp.zeros((1, m_p), jnp.float32).at[0, :m].set(c)

    grid = (n_p // tn,)
    out = pl.pallas_call(
        param_dist_kernel,
        out_shape=jax.ShapeDtypeStruct((n_p, m_p), jnp.float32),
        grid_spec=pltpu.PrefetchScalarGridSpec(
            num_scalar_prefetch=0,
            grid=grid,
            in_specs=[
                pl.BlockSpec((tn, d_p), lambda i: (i, 0)),    # x tile over n
                pl.BlockSpec((d_p, m_p), lambda i: (0, 0)),   # W^T resident
                pl.BlockSpec((1, m_p), lambda i: (0, 0)),     # c resident
            ],
            out_specs=pl.BlockSpec((tn, m_p), lambda i: (i, 0)),
        ),
        compiler_params=pltpu.CompilerParams(
            dimension_semantics=("parallel",),      # shards the n axis across TCs (v7x)
            vmem_limit_bytes=48 * 1024 * 1024,      # headroom, still < v7x 64 MiB physical
        ),
    )(x_p, wt_p, c_p)

    return out[:n, :m]


def param_dist_ref(x, y, w):
    n, d = x.shape
    m = y.shape[0]
    a = jnp.broadcast_to(x[:, None, :], (n, m, d))
    b = jnp.broadcast_to(y[None, :, :], (n, m, d))
    return -jnp.sum((a - b) * w[None, :, :], axis=2)


if __name__ == "__main__":
    # n x-samples, m y-samples, d features; module's Param_Dist(N, M) has N == m, M == d.
    n, m, d = 512, 256, 256

    key = jax.random.PRNGKey(0)
    kx, ky, kw = jax.random.split(key, 3)
    x = jax.random.normal(kx, (n, d), dtype=jnp.float32)
    y = jax.random.normal(ky, (m, d), dtype=jnp.float32)
    # torch.rand -> uniform [0, 1); deterministic synthetic init here.
    w = jax.random.uniform(kw, (m, d), dtype=jnp.float32)

    out = jax.block_until_ready(param_dist(x, y, w))

    ref = param_dist_ref(x, y, w)
    assert out.shape == (n, m)
    assert jnp.allclose(out, ref, atol=2e-3, rtol=2e-3), "mismatch vs reference"

    print("KERNEL_OK")
</pallas_src>

<mosaic_0001>
module attributes {stable_mosaic.version = 11 : i64} {
  func.func @param_dist_kernel(%arg0: i32, %arg1: memref<256x256xf32, #tpu.memory_space<vmem>>, %arg2: memref<256x256xf32, #tpu.memory_space<vmem>>, %arg3: memref<1x256xf32, #tpu.memory_space<vmem>>, %arg4: memref<256x256xf32, #tpu.memory_space<vmem>>) attributes {dimension_semantics = [#tpu.dimension_semantics<parallel>], iteration_bounds = array<i64: 2>, scalar_prefetch = 0 : i64, scratch_operands = 0 : i64, tpu.core_type = #tpu.core_type<tc>, window_params = [{transform_indices = @transform_0, window_bounds = array<i64: 256, 256>}, {pipeline_mode = #tpu.pipeline_mode<synchronous>, transform_indices = @transform_1, window_bounds = array<i64: 256, 256>}, {pipeline_mode = #tpu.pipeline_mode<synchronous>, transform_indices = @transform_2, window_bounds = array<i64: 1, 256>}, {transform_indices = @transform_3, window_bounds = array<i64: 256, 256>}]} {
    %c0 = arith.constant 0 : index
    %c0_0 = arith.constant 0 : index
    %0 = vector.load %arg1[%c0, %c0_0] : memref<256x256xf32, #tpu.memory_space<vmem>>, vector<256x256xf32>
    %c0_1 = arith.constant 0 : index
    %c0_2 = arith.constant 0 : index
    %1 = vector.load %arg2[%c0_1, %c0_2] : memref<256x256xf32, #tpu.memory_space<vmem>>, vector<256x256xf32>
    %cst = arith.constant dense<0.000000e+00> : vector<256x256xf32>
    %2 = tpu.matmul %0, %1, %cst {dimension_numbers = #tpu.dot_dimension_numbers<[1], [0], [0], [1], [0, 0, 1, 1], [], []>} : vector<256x256xf32>, vector<256x256xf32>, vector<256x256xf32> -> vector<256x256xf32>
    %c0_3 = arith.constant 0 : index
    %c0_4 = arith.constant 0 : index
    %3 = vector.load %arg3[%c0_3, %c0_4] : memref<1x256xf32, #tpu.memory_space<vmem>>, vector<1x256xf32>
    %4 = vector.broadcast %3 : vector<1x256xf32> to vector<256x256xf32>
    %5 = arith.subf %4, %2 : vector<256x256xf32>
    %c0_5 = arith.constant 0 : index
    %c0_6 = arith.constant 0 : index
    %6 = vector.load %arg4[%c0_5, %c0_6] : memref<256x256xf32, #tpu.memory_space<vmem>>, vector<256x256xf32>
    tpu.vector_store %arg4[%c0_5, %c0_6], %5 {strides = array<i32>} : memref<256x256xf32, #tpu.memory_space<vmem>>, vector<256x256xf32>,
    return
  }
  func.func @transform_0(%arg0: i32) -> (i32, i32) {
    %c0_i32 = arith.constant 0 : i32
    %c0_i32_0 = arith.constant 0 : i32
    return %arg0, %c0_i32 : i32, i32
  }
  func.func @transform_1(%arg0: i32) -> (i32, i32) {
    %c0_i32 = arith.constant 0 : i32
    %c0_i32_0 = arith.constant 0 : i32
    %c0_i32_1 = arith.constant 0 : i32
    return %c0_i32, %c0_i32_0 : i32, i32
  }
  func.func @transform_2(%arg0: i32) -> (i32, i32) {
    %c0_i32 = arith.constant 0 : i32
    %c0_i32_0 = arith.constant 0 : i32
    %c0_i32_1 = arith.constant 0 : i32
    return %c0_i32, %c0_i32_0 : i32, i32
  }
  func.func @transform_3(%arg0: i32) -> (i32, i32) {
    %c0_i32 = arith.constant 0 : i32
    %c0_i32_0 = arith.constant 0 : i32
    return %arg0, %c0_i32 : i32, i32
  }
}

</mosaic_0001>

<llo_original>
// kernel: tpu_custom_call.1
$region0: #{tpu_custom_call.1}
  #allocation0 [shape = 'u32[]', space=smem, size = 0x4, offset = 0x4, fixed_abs, tag = 'smem constant byte address 0x4 - core index']
  #allocation1 [shape = 'u32[72,128]{1,0:T(1,128)}', space=vmem, size = 0x9000, scoped, tag = 'internal scratch']
  %s0 = inlined_call_operand.hbm [shape: f32[512,256], index: 0, kind: input, shape index: {}]
  %s1 = inlined_call_operand.hbm [shape: f32[256,256], index: 1, kind: input, shape index: {}]
  %s2 = inlined_call_operand.hbm [shape: f32[1,256], index: 2, kind: input, shape index: {}]
  %s3 = inlined_call_operand.hbm [shape: f32[512,256], index: 3, kind: output, shape index: {}]
  %s4 = sld [smem:[#allocation0]]
  $region57: #{tpu_custom_call.1} parent=0
    _
  %s6 = ssub.s32 1, %s4
  %s7 = scalar_select 0, %s6, %s4
  $region1: #{tpu_custom_call.1} parent=0
    #allocation2 [shape = 'u8[524288]{0}', space=vmem, size = 0x80000, scoped, tag = 'input window, operand 0']
    #allocation3 [shape = 's32[2]{0}', space=sflag, size = 0x8, scoped, tag = 'scoped memory for tpu_custom_call.1']
    #allocation4 [shape = 's32[2]{0}', space=sflag, size = 0x8, scoped, tag = 'scoped memory for tpu_custom_call.1']
    #allocation5 [shape = 'u8[262144]{0}', space=vmem, size = 0x40000, scoped, tag = 'input window, operand 1, single buffered']
    #allocation6 [shape = 's32[1]{0}', space=sflag, size = 0x4, scoped, tag = 'scoped memory for tpu_custom_call.1']
    #allocation7 [shape = 'u8[1024]{0}', space=vmem, size = 0x400, scoped, tag = 'input window, operand 2, single buffered']
    #allocation8 [shape = 'u8[524288]{0}', space=vmem, size = 0x80000, scoped, tag = 'output window, operand 0']
    %8 = vsyncpa [#allocation3], 0
    %s9 = scalar_lea.sflag [#allocation3], 1
    %10 = vsyncpa %s9, 0
    %11 = vsyncpa [#allocation6], 0
    %12 = vsyncpa [#allocation4], 0
    %s13 = scalar_lea.sflag [#allocation4], 1
    %14 = vsyncpa %s13, 0
    loop: start=0, step=1, limit=4
    $region2: #{tpu_custom_call.1} parent=1 // loop_pre_header
      _
    $region3: #{tpu_custom_call.1} parent=1 // loop_header
      %s16 = sphi 0, %s20
      %p17 = scmp.ge.s32.totalorder %s16, 4
      %s26 = sphi 0, %s28
      %s29 = sphi 0, %s26
      %s30 = sphi 0, %s29
      %s46 = sphi 0, %s30
      %s50 = sphi 0, %s50
      %s52 = sphi 0, %s50
      %s53 = sphi 0, %s52
      %s67 = sphi 0, %s53
      %s71 = sphi 0, %s71
      %s73 = sphi 0, %s71
      %s74 = sphi 0, %s73
      %s88 = sphi 0, %s74
      %s94 = sphi 0, %s96
      %s97 = sphi 0, %s94
      %s98 = sphi 0, %s97
      %s114 = sphi 0, %s98
    $region4: #{tpu_custom_call.1} parent=1 // loop_header_branch
      %19 = sbr.rel (%p17) target = $region8
    $region5: #{tpu_custom_call.1} parent=1 // loop_body
      %s21 = ssub.s32 %s16, 1
      %s22 = ssub.s32 %s16, 2
      %s23 = sadd.s32 %s16, 1
      %s24 = ssub.s32 %s16, %s23
      %p25 = scmp.eq.s32.totalorder %s24, 0
      %s27 = sadd.s32 %s26, 1
      %s28 = scalar_select %p25, %s26, %s27
      %p31 = pneg %p25
      %p32 = scmp.eq.s32.totalorder %s16, 1
      %p33 = por %p31, %p32
      %p34 = scmp.ne.s32.totalorder %s26, %s29
      %p35 = scmp.eq.s32.totalorder %s16, 0
      %p36 = por %p34, %p35
      %p37 = scmp.ne.s32.totalorder %s26, %s29
      %p38 = scmp.eq.s32.totalorder %s21, 1
      %p39 = por %p37, %p38
      %p40 = scmp.ne.s32.totalorder %s29, %s30
      %p41 = scmp.eq.s32.totalorder %s21, 0
      %p42 = por %p40, %p41
      %p43 = scmp.ne.s32.totalorder %s29, %s30
      %p44 = scmp.eq.s32.totalorder %s22, 1
      %p45 = por %p43, %p44
      %p47 = scmp.ne.s32.totalorder %s30, %s46
      %p48 = scmp.eq.s32.totalorder %s22, 0
      %p49 = por %p47, %p48
      %s51 = sadd.s32 %s50, 1
      %p54 = scmp.eq.s32.totalorder %s16, 1
      %p55 = scmp.ne.s32.totalorder %s50, %s52
      %p56 = scmp.eq.s32.totalorder %s16, 0
      %p57 = por %p55, %p56
      %p58 = scmp.ne.s32.totalorder %s50, %s52
      %p59 = scmp.eq.s32.totalorder %s21, 1
      %p60 = por %p58, %p59
      %p61 = scmp.ne.s32.totalorder %s52, %s53
      %p62 = scmp.eq.s32.totalorder %s21, 0
      %p63 = por %p61, %p62
      %p64 = scmp.ne.s32.totalorder %s52, %s53
      %p65 = scmp.eq.s32.totalorder %s22, 1
      %p66 = por %p64, %p65
      %p68 = scmp.ne.s32.totalorder %s53, %s67
      %p69 = scmp.eq.s32.totalorder %s22, 0
      %p70 = por %p68, %p69
      %s72 = sadd.s32 %s71, 1
      %p75 = scmp.eq.s32.totalorder %s16, 1
      %p76 = scmp.ne.s32.totalorder %s71, %s73
      %p77 = scmp.eq.s32.totalorder %s16, 0
      %p78 = por %p76, %p77
      %p79 = scmp.ne.s32.totalorder %s71, %s73
      %p80 = scmp.eq.s32.totalorder %s21, 1
      %p81 = por %p79, %p80
      %p82 = scmp.ne.s32.totalorder %s73, %s74
      %p83 = scmp.eq.s32.totalorder %s21, 0
      %p84 = por %p82, %p83
      %p85 = scmp.ne.s32.totalorder %s73, %s74
      %p86 = scmp.eq.s32.totalorder %s22, 1
      %p87 = por %p85, %p86
      %p89 = scmp.ne.s32.totalorder %s74, %s88
      %p90 = scmp.eq.s32.totalorder %s22, 0
      %p91 = por %p89, %p90
      %s92 = ssub.s32 %s16, %s23
      %p93 = scmp.eq.s32.totalorder %s92, 0
      %s95 = sadd.s32 %s94, 1
      %s96 = scalar_select %p93, %s94, %s95
      %p99 = pneg %p93
      %p100 = scmp.eq.s32.totalorder %s16, 1
      %p101 = por %p99, %p100
      %p102 = scmp.ne.s32.totalorder %s94, %s97
      %p103 = scmp.eq.s32.totalorder %s16, 0
      %p104 = por %p102, %p103
      %p105 = scmp.ne.s32.totalorder %s94, %s97
      %p106 = scmp.eq.s32.totalorder %s21, 1
      %p107 = por %p105, %p106
      %p108 = scmp.ne.s32.totalorder %s97, %s98
      %p109 = scmp.eq.s32.totalorder %s21, 0
      %p110 = por %p108, %p109
      %p111 = scmp.ne.s32.totalorder %s97, %s98
      %p112 = scmp.eq.s32.totalorder %s22, 1
      %p113 = por %p111, %p112
      %p115 = scmp.ne.s32.totalorder %s98, %s114
      %p116 = scmp.eq.s32.totalorder %s22, 0
      %p117 = por %p115, %p116
      %p118 = scmp.le.s32.totalorder 1, %s16
      %p119 = scmp.lt.s32.totalorder %s16, 3
      %p120 = pnand %p118, %p119
      %p121 = pneg %p120
      // Predicated region
      $region9: #{tpu_custom_call.1} parent=5 // pred_check
        _
      $region10: #{tpu_custom_call.1} parent=5 // pred_check_branch
        %123 = sbr.rel (%p120) target = $region12
      $region11: #{tpu_custom_call.1} parent=5 // pred_region
        %s124 = ssub.s32 %s16, 1
        // Predicated region
        $region13: #{tpu_custom_call.1} parent=11 // pred_check
          %p125 = pneg %p63
        $region14: #{tpu_custom_call.1} parent=11 // pred_check_branch
          %127 = sbr.rel (%p125) target = $region16
        $region15: #{tpu_custom_call.1} parent=11 // pred_region
          %129 = vsyncadd [#allocation6], 0
          %s130 = sshll.u32 %s1, 4
          %s131 = int_to_ptr.hbm [resolvable:$true] %s130
          %s132 = sshll.u32 [#allocation5], 4
          %s133 = int_to_ptr.vmem [resolvable:$true] %s132
          %138 = dma.hbm_to_vmem [thread:$0]  %s131, 8192, %s133, [#allocation6], 256, 256, 16
        $region16: #{tpu_custom_call.1} parent=11 // pred_fallthru
          _
        // Predicated region
        $region17: #{tpu_custom_call.1} parent=11 // pred_check
          %p139 = pneg %p84
        $region18: #{tpu_custom_call.1} parent=11 // pred_check_branch
          %141 = sbr.rel (%p139) target = $region20
        $region19: #{tpu_custom_call.1} parent=11 // pred_region
          %143 = vsyncadd [#allocation6], 0
          %s145 = sshll.u32 %s2, 4
          %s146 = int_to_ptr.hbm [resolvable:$true] %s145
          %s147 = sshll.u32 [#allocation7], 4
          %s148 = int_to_ptr.vmem [resolvable:$true] %s147
          %150 = dma.hbm_to_vmem [thread:$0]  %s146, 32, %s148, [#allocation6]
        $region20: #{tpu_custom_call.1} parent=11 // pred_fallthru
          _
      $region12: #{tpu_custom_call.1} parent=5 // pred_fallthru
        _
      %p151 = scmp.lt.s32.totalorder %s16, 2
      // Predicated region
      $region21: #{tpu_custom_call.1} parent=5 // pred_check
        %p152 = pneg %p151
      $region22: #{tpu_custom_call.1} parent=5 // pred_check_branch
        %154 = sbr.rel (%p152) target = $region24
      $region23: #{tpu_custom_call.1} parent=5 // pred_region
        // Predicated region
        $region25: #{tpu_custom_call.1} parent=23 // pred_check
          %p155 = pneg %p36
        $region26: #{tpu_custom_call.1} parent=23 // pred_check_branch
          %157 = sbr.rel (%p155) target = $region28
        $region27: #{tpu_custom_call.1} parent=23 // pred_region
          %s158 = sand.u32 %s26, 1
          %s159 = scalar_lea.sflag [#allocation3], %s158
          %s160 = sand.u32 %s26, 1
          %s161 = smul.addr %s160, 512
          %s162 = scalar_lea.vmem [#allocation2], %s161
          %s163 = smul.u32 32, %s16
          %165 = vsyncadd %s159, 0
          %s166 = smul.addr %s163, 2
          %s167 = smul.addr %s166, 8
          %s168 = scalar_lea.hbm %s0, %s167
          %s169 = sshll.u32 %s168, 4
          %s170 = int_to_ptr.hbm [resolvable:$true] %s169
          %s171 = sshll.u32 %s162, 4
          %s172 = int_to_ptr.vmem [resolvable:$true] %s171
          %177 = dma.hbm_to_vmem [thread:$0]  %s170, 8192, %s172, %s159, 256, 256, 16
        $region28: #{tpu_custom_call.1} parent=23 // pred_fallthru
          _
      $region24: #{tpu_custom_call.1} parent=5 // pred_fallthru
        _
      %p178 = scmp.le.s32.totalorder 1, %s16
      %p179 = scmp.lt.s32.totalorder %s16, 3
      %p180 = pnand %p178, %p179
      %p181 = pneg %p180
      // Predicated region
      $region29: #{tpu_custom_call.1} parent=5 // pred_check
        _
      $region30: #{tpu_custom_call.1} parent=5 // pred_check_branch
        %183 = sbr.rel (%p180) target = $region32
      $region31: #{tpu_custom_call.1} parent=5 // pred_region
        %s184 = ssub.s32 %s16, 1
        %s185 = sand.u32 %s29, 1
        %s186 = scalar_lea.sflag [#allocation3], %s185
        %s187 = sand.u32 %s29, 1
        %s188 = smul.addr %s187, 512
        %s189 = scalar_lea.vmem [#allocation2], %s188
        // Predicated region
        $region33: #{tpu_custom_call.1} parent=31 // pred_check
          %p190 = pneg %p42
        $region34: #{tpu_custom_call.1} parent=31 // pred_check_branch
          %192 = sbr.rel (%p190) target = $region36
        $region35: #{tpu_custom_call.1} parent=31 // pred_region
          %194 = dma.done %s186, 8192
        $region36: #{tpu_custom_call.1} parent=31 // pred_fallthru
          _
        // Predicated region
        $region37: #{tpu_custom_call.1} parent=31 // pred_check
          %p195 = pneg %p63
        $region38: #{tpu_custom_call.1} parent=31 // pred_check_branch
          %197 = sbr.rel (%p195) target = $region40
        $region39: #{tpu_custom_call.1} parent=31 // pred_region
          %199 = dma.done [#allocation6], 8192
        $region40: #{tpu_custom_call.1} parent=31 // pred_fallthru
          _
        // Predicated region
        $region41: #{tpu_custom_call.1} parent=31 // pred_check
          %p200 = pneg %p84
        $region42: #{tpu_custom_call.1} parent=31 // pred_check_branch
          %202 = sbr.rel (%p200) target = $region44
        $region43: #{tpu_custom_call.1} parent=31 // pred_region
          %204 = dma.done [#allocation6], 32
        $region44: #{tpu_custom_call.1} parent=31 // pred_fallthru
          _
        %s205 = sand.u32 %s29, 1
        %s206 = scalar_lea.sflag [#allocation3], %s205
        %s207 = sand.u32 %s29, 1
        %s208 = smul.addr %s207, 512
        %s209 = scalar_lea.vmem [#allocation2], %s208
        %p210 = pneg %p42
        %p211 = pneg %p39
        %p212 = pneg %p63
        %p213 = pneg %p60
        %p214 = pneg %p84
        %p215 = pneg %p81
        %p216 = pneg %p110
        %p217 = pneg %p107
        %s218 = sand.u32 %s97, 1
        %s219 = scalar_lea.sflag [#allocation4], %s218
        %s220 = sand.u32 %s97, 1
        %s221 = smul.addr %s220, 512
        %s222 = scalar_lea.vmem [#allocation8], %s221
        %s223 = smul.u32 32, %s21
        %s224 = smul.u32 32, %s21
        %v225 = vld [vmem:[%s189] sm:$0xff]
        %v226 = vld [vmem:[%s189 + $0x8] sm:$0xff]
        %v227 = vld [vmem:[%s189 + $0x10] sm:$0xff]
        %v228 = vld [vmem:[%s189 + $0x18] sm:$0xff]
        %v229 = vld [vmem:[%s189 + $0x20] sm:$0xff]
        %v230 = vld [vmem:[%s189 + $0x28] sm:$0xff]
        %v231 = vld [vmem:[%s189 + $0x30] sm:$0xff]
        %v232 = vld [vmem:[%s189 + $0x38] sm:$0xff]
        %v233 = vld [vmem:[%s189 + $0x40] sm:$0xff]
        %v234 = vld [vmem:[%s189 + $0x48] sm:$0xff]
        %v235 = vld [vmem:[%s189 + $0x50] sm:$0xff]
        %v236 = vld [vmem:[%s189 + $0x58] sm:$0xff]
        %v237 = vld [vmem:[%s189 + $0x60] sm:$0xff]
        %v238 = vld [vmem:[%s189 + $0x68] sm:$0xff]
        %v239 = vld [vmem:[%s189 + $0x70] sm:$0xff]
        %v240 = vld [vmem:[%s189 + $0x78] sm:$0xff]
        %v241 = vld [vmem:[%s189 + $0x80] sm:$0xff]
        %v242 = vld [vmem:[%s189 + $0x88] sm:$0xff]
        %v243 = vld [vmem:[%s189 + $0x90] sm:$0xff]
        %v244 = vld [vmem:[%s189 + $0x98] sm:$0xff]
        %v245 = vld [vmem:[%s189 + $0xa0] sm:$0xff]
        %v246 = vld [vmem:[%s189 + $0xa8] sm:$0xff]
        %v247 = vld [vmem:[%s189 + $0xb0] sm:$0xff]
        %v248 = vld [vmem:[%s189 + $0xb8] sm:$0xff]
        %v249 = vld [vmem:[%s189 + $0xc0] sm:$0xff]
        %v250 = vld [vmem:[%s189 + $0xc8] sm:$0xff]
        %v251 = vld [vmem:[%s189 + $0xd0] sm:$0xff]
        %v252 = vld [vmem:[%s189 + $0xd8] sm:$0xff]
        %v253 = vld [vmem:[%s189 + $0xe0] sm:$0xff]
        %v254 = vld [vmem:[%s189 + $0xe8] sm:$0xff]
        %v255 = vld [vmem:[%s189 + $0xf0] sm:$0xff]
        %v256 = vld [vmem:[%s189 + $0xf8] sm:$0xff]
        %v257 = vld [vmem:[%s189 + $0x100] sm:$0xff]
        %v258 = vld [vmem:[%s189 + $0x108] sm:$0xff]
        %v259 = vld [vmem:[%s189 + $0x110] sm:$0xff]
        %v260 = vld [vmem:[%s189 + $0x118] sm:$0xff]
        %v261 = vld [vmem:[%s189 + $0x120] sm:$0xff]
        %v262 = vld [vmem:[%s189 + $0x128] sm:$0xff]
        %v263 = vld [vmem:[%s189 + $0x130] sm:$0xff]
        %v264 = vld [vmem:[%s189 + $0x138] sm:$0xff]
        %v265 = vld [vmem:[%s189 + $0x140] sm:$0xff]
        %v266 = vld [vmem:[%s189 + $0x148] sm:$0xff]
        %v267 = vld [vmem:[%s189 + $0x150] sm:$0xff]
        %v268 = vld [vmem:[%s189 + $0x158] sm:$0xff]
        %v269 = vld [vmem:[%s189 + $0x160] sm:$0xff]
        %v270 = vld [vmem:[%s189 + $0x168] sm:$0xff]
        %v271 = vld [vmem:[%s189 + $0x170] sm:$0xff]
        %v272 = vld [vmem:[%s189 + $0x178] sm:$0xff]
        %v273 = vld [vmem:[%s189 + $0x180] sm:$0xff]
        %v274 = vld [vmem:[%s189 + $0x188] sm:$0xff]
        %v275 = vld [vmem:[%s189 + $0x190] sm:$0xff]
        %v276 = vld [vmem:[%s189 + $0x198] sm:$0xff]
        %v277 = vld [vmem:[%s189 + $0x1a0] sm:$0xff]
        %v278 = vld [vmem:[%s189 + $0x1a8] sm:$0xff]
        %v279 = vld [vmem:[%s189 + $0x1b0] sm:$0xff]
        %v280 = vld [vmem:[%s189 + $0x1b8] sm:$0xff]
        %v281 = vld [vmem:[%s189 + $0x1c0] sm:$0xff]
        %v282 = vld [vmem:[%s189 + $0x1c8] sm:$0xff]
        %v283 = vld [vmem:[%s189 + $0x1d0] sm:$0xff]
        %v284 = vld [vmem:[%s189 + $0x1d8] sm:$0xff]
        %v285 = vld [vmem:[%s189 + $0x1e0] sm:$0xff]
        %v286 = vld [vmem:[%s189 + $0x1e8] sm:$0xff]
        %v287 = vld [vmem:[%s189 + $0x1f0] sm:$0xff]
        %v288 = vld [vmem:[%s189 + $0x1f8] sm:$0xff]
        %v289 = vld [vmem:[#allocation5] sm:$0xff]
        %v290 = vld [vmem:[#allocation5 + $0x8] sm:$0xff]
        %v291 = vld [vmem:[#allocation5 + $0x10] sm:$0xff]
        %v292 = vld [vmem:[#allocation5 + $0x18] sm:$0xff]
        %v293 = vld [vmem:[#allocation5 + $0x20] sm:$0xff]
        %v294 = vld [vmem:[#allocation5 + $0x28] sm:$0xff]
        %v295 = vld [vmem:[#allocation5 + $0x30] sm:$0xff]
        %v296 = vld [vmem:[#allocation5 + $0x38] sm:$0xff]
        %v297 = vld [vmem:[#allocation5 + $0x40] sm:$0xff]
        %v298 = vld [vmem:[#allocation5 + $0x48] sm:$0xff]
        %v299 = vld [vmem:[#allocation5 + $0x50] sm:$0xff]
        %v300 = vld [vmem:[#allocation5 + $0x58] sm:$0xff]
        %v301 = vld [vmem:[#allocation5 + $0x60] sm:$0xff]
        %v302 = vld [vmem:[#allocation5 + $0x68] sm:$0xff]
        %v303 = vld [vmem:[#allocation5 + $0x70] sm:$0xff]
        %v304 = vld [vmem:[#allocation5 + $0x78] sm:$0xff]
        %v305 = vld [vmem:[#allocation5 + $0x80] sm:$0xff]
        %v306 = vld [vmem:[#allocation5 + $0x88] sm:$0xff]
        %v307 = vld [vmem:[#allocation5 + $0x90] sm:$0xff]
        %v308 = vld [vmem:[#allocation5 + $0x98] sm:$0xff]
        %v309 = vld [vmem:[#allocation5 + $0xa0] sm:$0xff]
        %v310 = vld [vmem:[#allocation5 + $0xa8] sm:$0xff]
        %v311 = vld [vmem:[#allocation5 + $0xb0] sm:$0xff]
        %v312 = vld [vmem:[#allocation5 + $0xb8] sm:$0xff]
        %v313 = vld [vmem:[#allocation5 + $0xc0] sm:$0xff]
        %v314 = vld [vmem:[#allocation5 + $0xc8] sm:$0xff]
        %v315 = vld [vmem:[#allocation5 + $0xd0] sm:$0xff]
        %v316 = vld [vmem:[#allocation5 + $0xd8] sm:$0xff]
        %v317 = vld [vmem:[#allocation5 + $0xe0] sm:$0xff]
        %v318 = vld [vmem:[#allocation5 + $0xe8] sm:$0xff]
        %v319 = vld [vmem:[#allocation5 + $0xf0] sm:$0xff]
        %v320 = vld [vmem:[#allocation5 + $0xf8] sm:$0xff]
        %v321 = vld [vmem:[#allocation5 + $0x100] sm:$0xff]
        %v322 = vld [vmem:[#allocation5 + $0x108] sm:$0xff]
        %v323 = vld [vmem:[#allocation5 + $0x110] sm:$0xff]
        %v324 = vld [vmem:[#allocation5 + $0x118] sm:$0xff]
        %v325 = vld [vmem:[#allocation5 + $0x120] sm:$0xff]
        %v326 = vld [vmem:[#allocation5 + $0x128] sm:$0xff]
        %v327 = vld [vmem:[#allocation5 + $0x130] sm:$0xff]
        %v328 = vld [vmem:[#allocation5 + $0x138] sm:$0xff]
        %v329 = vld [vmem:[#allocation5 + $0x140] sm:$0xff]
        %v330 = vld [vmem:[#allocation5 + $0x148] sm:$0xff]
        %v331 = vld [vmem:[#allocation5 + $0x150] sm:$0xff]
        %v332 = vld [vmem:[#allocation5 + $0x158] sm:$0xff]
        %v333 = vld [vmem:[#allocation5 + $0x160] sm:$0xff]
        %v334 = vld [vmem:[#allocation5 + $0x168] sm:$0xff]
        %v335 = vld [vmem:[#allocation5 + $0x170] sm:$0xff]
        %v336 = vld [vmem:[#allocation5 + $0x178] sm:$0xff]
        %v337 = vld [vmem:[#allocation5 + $0x180] sm:$0xff]
        %v338 = vld [vmem:[#allocation5 + $0x188] sm:$0xff]
        %v339 = vld [vmem:[#allocation5 + $0x190] sm:$0xff]
        %v340 = vld [vmem:[#allocation5 + $0x198] sm:$0xff]
        %v341 = vld [vmem:[#allocation5 + $0x1a0] sm:$0xff]
        %v342 = vld [vmem:[#allocation5 + $0x1a8] sm:$0xff]
        %v343 = vld [vmem:[#allocation5 + $0x1b0] sm:$0xff]
        %v344 = vld [vmem:[#allocation5 + $0x1b8] sm:$0xff]
        %v345 = vld [vmem:[#allocation5 + $0x1c0] sm:$0xff]
        %v346 = vld [vmem:[#allocation5 + $0x1c8] sm:$0xff]
        %v347 = vld [vmem:[#allocation5 + $0x1d0] sm:$0xff]
        %v348 = vld [vmem:[#allocation5 + $0x1d8] sm:$0xff]
        %v349 = vld [vmem:[#allocation5 + $0x1e0] sm:$0xff]
        %v350 = vld [vmem:[#allocation5 + $0x1e8] sm:$0xff]
        %v351 = vld [vmem:[#allocation5 + $0x1f0] sm:$0xff]
        %v352 = vld [vmem:[#allocation5 + $0x1f8] sm:$0xff]
        %353 = vmatpush.msra.mxu0 %v319
        %354 = vmatpush.msra.mxu0 %v317
        %355 = vmatpush.msra.mxu0 %v315
        %356 = vmatpush.msra.mxu0 %v313
        %357 = vmatpush.msra.mxu0 %v311
        %358 = vmatpush.msra.mxu0 %v309
        %359 = vmatpush.msra.mxu0 %v307
        %360 = vmatpush.msra.mxu0 %v305
        %361 = vmatpush.msra.mxu0 %v303
        %362 = vmatpush.msra.mxu0 %v301
        %363 = vmatpush.msra.mxu0 %v299
        %364 = vmatpush.msra.mxu0 %v297
        %365 = vmatpush.msra.mxu0 %v295
        %366 = vmatpush.msra.mxu0 %v293
        %367 = vmatpush.msra.mxu0 %v291
        %368 = vmatpush.msra.mxu0 %v289
        %369 = vmatmul.f32.gmra.mxu0 %v225
        %v370 = vpop.f32.mrf.mxu0
        %v371 = vadd.f32 0.0, %v370
        %372 = vmatmul.f32.gmra.mxu0 %v227
        %v373 = vpop.f32.mrf.mxu0
        %v374 = vadd.f32 0.0, %v373
        %375 = vmatmul.f32.gmra.mxu0 %v229
        %v376 = vpop.f32.mrf.mxu0
        %v377 = vadd.f32 0.0, %v376
        %378 = vmatmul.f32.gmra.mxu0 %v231
        %v379 = vpop.f32.mrf.mxu0
        %v380 = vadd.f32 0.0, %v379
        %381 = vmatmul.f32.gmra.mxu0 %v233
        %v382 = vpop.f32.mrf.mxu0
        %v383 = vadd.f32 0.0, %v382
        %384 = vmatmul.f32.gmra.mxu0 %v235
        %v385 = vpop.f32.mrf.mxu0
        %v386 = vadd.f32 0.0, %v385
        %387 = vmatmul.f32.gmra.mxu0 %v237
        %v388 = vpop.f32.mrf.mxu0
        %v389 = vadd.f32 0.0, %v388
        %390 = vmatmul.f32.gmra.mxu0 %v239
        %v391 = vpop.f32.mrf.mxu0
        %v392 = vadd.f32 0.0, %v391
        %393 = vmatmul.f32.gmra.mxu0 %v241
        %v394 = vpop.f32.mrf.mxu0
        %v395 = vadd.f32 0.0, %v394
        %396 = vmatmul.f32.gmra.mxu0 %v243
        %v397 = vpop.f32.mrf.mxu0
        %v398 = vadd.f32 0.0, %v397
        %399 = vmatmul.f32.gmra.mxu0 %v245
        %v400 = vpop.f32.mrf.mxu0
        %v401 = vadd.f32 0.0, %v400
        %402 = vmatmul.f32.gmra.mxu0 %v247
        %v403 = vpop.f32.mrf.mxu0
        %v404 = vadd.f32 0.0, %v403
        %405 = vmatmul.f32.gmra.mxu0 %v249
        %v406 = vpop.f32.mrf.mxu0
        %v407 = vadd.f32 0.0, %v406
        %408 = vmatmul.f32.gmra.mxu0 %v251
        %v409 = vpop.f32.mrf.mxu0
        %v410 = vadd.f32 0.0, %v409
        %411 = vmatmul.f32.gmra.mxu0 %v253
        %v412 = vpop.f32.mrf.mxu0
        %v413 = vadd.f32 0.0, %v412
        %414 = vmatmul.f32.gmra.mxu0 %v255
        %v415 = vpop.f32.mrf.mxu0
        %v416 = vadd.f32 0.0, %v415
        %417 = vmatmul.f32.gmra.mxu0 %v257
        %v418 = vpop.f32.mrf.mxu0
        %v419 = vadd.f32 0.0, %v418
        %420 = vmatmul.f32.gmra.mxu0 %v259
        %v421 = vpop.f32.mrf.mxu0
        %v422 = vadd.f32 0.0, %v421
        %423 = vmatmul.f32.gmra.mxu0 %v261
        %v424 = vpop.f32.mrf.mxu0
        %v425 = vadd.f32 0.0, %v424
        %426 = vmatmul.f32.gmra.mxu0 %v263
        %v427 = vpop.f32.mrf.mxu0
        %v428 = vadd.f32 0.0, %v427
        %429 = vmatmul.f32.gmra.mxu0 %v265
        %v430 = vpop.f32.mrf.mxu0
        %v431 = vadd.f32 0.0, %v430
        %432 = vmatmul.f32.gmra.mxu0 %v267
        %v433 = vpop.f32.mrf.mxu0
        %v434 = vadd.f32 0.0, %v433
        %435 = vmatmul.f32.gmra.mxu0 %v269
        %v436 = vpop.f32.mrf.mxu0
        %v437 = vadd.f32 0.0, %v436
        %438 = vmatmul.f32.gmra.mxu0 %v271
        %v439 = vpop.f32.mrf.mxu0
        %v440 = vadd.f32 0.0, %v439
        %441 = vmatmul.f32.gmra.mxu0 %v273
        %v442 = vpop.f32.mrf.mxu0
        %v443 = vadd.f32 0.0, %v442
        %444 = vmatmul.f32.gmra.mxu0 %v275
        %v445 = vpop.f32.mrf.mxu0
        %v446 = vadd.f32 0.0, %v445
        %447 = vmatmul.f32.gmra.mxu0 %v277
        %v448 = vpop.f32.mrf.mxu0
        %v449 = vadd.f32 0.0, %v448
        %450 = vmatmul.f32.gmra.mxu0 %v279
        %v451 = vpop.f32.mrf.mxu0
        %v452 = vadd.f32 0.0, %v451
        %453 = vmatmul.f32.gmra.mxu0 %v281
        %v454 = vpop.f32.mrf.mxu0
        %v455 = vadd.f32 0.0, %v454
        %456 = vmatmul.f32.gmra.mxu0 %v283
        %v457 = vpop.f32.mrf.mxu0
        %v458 = vadd.f32 0.0, %v457
        %459 = vmatmul.f32.gmra.mxu0 %v285
        %v460 = vpop.f32.mrf.mxu0
        %v461 = vadd.f32 0.0, %v460
        %462 = vmatmul.f32.gmra.mxu0 %v287
        %v463 = vpop.f32.mrf.mxu0
        %v464 = vadd.f32 0.0, %v463
        %465 = vdwg.mxu0
        %466 = vmatpush.msra.mxu0 %v351
        %467 = vmatpush.msra.mxu0 %v349
        %468 = vmatpush.msra.mxu0 %v347
        %469 = vmatpush.msra.mxu0 %v345
        %470 = vmatpush.msra.mxu0 %v343
        %471 = vmatpush.msra.mxu0 %v341
        %472 = vmatpush.msra.mxu0 %v339
        %473 = vmatpush.msra.mxu0 %v337
        %474 = vmatpush.msra.mxu0 %v335
        %475 = vmatpush.msra.mxu0 %v333
        %476 = vmatpush.msra.mxu0 %v331
        %477 = vmatpush.msra.mxu0 %v329
        %478 = vmatpush.msra.mxu0 %v327
        %479 = vmatpush.msra.mxu0 %v325
        %480 = vmatpush.msra.mxu0 %v323
        %481 = vmatpush.msra.mxu0 %v321
        %482 = vmatmul.f32.gmra.mxu0 %v226
        %v483 = vpop.f32.mrf.mxu0
        %v484 = vadd.f32 %v371, %v483
        %485 = vmatmul.f32.gmra.mxu0 %v228
        %v486 = vpop.f32.mrf.mxu0
        %v487 = vadd.f32 %v374, %v486
        %488 = vmatmul.f32.gmra.mxu0 %v230
        %v489 = vpop.f32.mrf.mxu0
        %v490 = vadd.f32 %v377, %v489
        %491 = vmatmul.f32.gmra.mxu0 %v232
        %v492 = vpop.f32.mrf.mxu0
        %v493 = vadd.f32 %v380, %v492
        %494 = vmatmul.f32.gmra.mxu0 %v234
        %v495 = vpop.f32.mrf.mxu0
        %v496 = vadd.f32 %v383, %v495
        %497 = vmatmul.f32.gmra.mxu0 %v236
        %v498 = vpop.f32.mrf.mxu0
        %v499 = vadd.f32 %v386, %v498
        %500 = vmatmul.f32.gmra.mxu0 %v238
        %v501 = vpop.f32.mrf.mxu0
        %v502 = vadd.f32 %v389, %v501
        %503 = vmatmul.f32.gmra.mxu0 %v240
        %v504 = vpop.f32.mrf.mxu0
        %v505 = vadd.f32 %v392, %v504
        %506 = vmatmul.f32.gmra.mxu0 %v242
        %v507 = vpop.f32.mrf.mxu0
        %v508 = vadd.f32 %v395, %v507
        %509 = vmatmul.f32.gmra.mxu0 %v244
        %v510 = vpop.f32.mrf.mxu0
        %v511 = vadd.f32 %v398, %v510
        %512 = vmatmul.f32.gmra.mxu0 %v246
        %v513 = vpop.f32.mrf.mxu0
        %v514 = vadd.f32 %v401, %v513
        %515 = vmatmul.f32.gmra.mxu0 %v248
        %v516 = vpop.f32.mrf.mxu0
        %v517 = vadd.f32 %v404, %v516
        %518 = vmatmul.f32.gmra.mxu0 %v250
        %v519 = vpop.f32.mrf.mxu0
        %v520 = vadd.f32 %v407, %v519
        %521 = vmatmul.f32.gmra.mxu0 %v252
        %v522 = vpop.f32.mrf.mxu0
        %v523 = vadd.f32 %v410, %v522
        %524 = vmatmul.f32.gmra.mxu0 %v254
        %v525 = vpop.f32.mrf.mxu0
        %v526 = vadd.f32 %v413, %v525
        %527 = vmatmul.f32.gmra.mxu0 %v256
        %v528 = vpop.f32.mrf.mxu0
        %v529 = vadd.f32 %v416, %v528
        %530 = vmatmul.f32.gmra.mxu0 %v258
        %v531 = vpop.f32.mrf.mxu0
        %v532 = vadd.f32 %v419, %v531
        %533 = vmatmul.f32.gmra.mxu0 %v260
        %v534 = vpop.f32.mrf.mxu0
        %v535 = vadd.f32 %v422, %v534
        %536 = vmatmul.f32.gmra.mxu0 %v262
        %v537 = vpop.f32.mrf.mxu0
        %v538 = vadd.f32 %v425, %v537
        %539 = vmatmul.f32.gmra.mxu0 %v264
        %v540 = vpop.f32.mrf.mxu0
        %v541 = vadd.f32 %v428, %v540
        %542 = vmatmul.f32.gmra.mxu0 %v266
        %v543 = vpop.f32.mrf.mxu0
        %v544 = vadd.f32 %v431, %v543
        %545 = vmatmul.f32.gmra.mxu0 %v268
        %v546 = vpop.f32.mrf.mxu0
        %v547 = vadd.f32 %v434, %v546
        %548 = vmatmul.f32.gmra.mxu0 %v270
        %v549 = vpop.f32.mrf.mxu0
        %v550 = vadd.f32 %v437, %v549
        %551 = vmatmul.f32.gmra.mxu0 %v272
        %v552 = vpop.f32.mrf.mxu0
        %v553 = vadd.f32 %v440, %v552
        %554 = vmatmul.f32.gmra.mxu0 %v274
        %v555 = vpop.f32.mrf.mxu0
        %v556 = vadd.f32 %v443, %v555
        %557 = vmatmul.f32.gmra.mxu0 %v276
        %v558 = vpop.f32.mrf.mxu0
        %v559 = vadd.f32 %v446, %v558
        %560 = vmatmul.f32.gmra.mxu0 %v278
        %v561 = vpop.f32.mrf.mxu0
        %v562 = vadd.f32 %v449, %v561
        %563 = vmatmul.f32.gmra.mxu0 %v280
        %v564 = vpop.f32.mrf.mxu0
        %v565 = vadd.f32 %v452, %v564
        %566 = vmatmul.f32.gmra.mxu0 %v282
        %v567 = vpop.f32.mrf.mxu0
        %v568 = vadd.f32 %v455, %v567
        %569 = vmatmul.f32.gmra.mxu0 %v284
        %v570 = vpop.f32.mrf.mxu0
        %v571 = vadd.f32 %v458, %v570
        %572 = vmatmul.f32.gmra.mxu0 %v286
        %v573 = vpop.f32.mrf.mxu0
        %v574 = vadd.f32 %v461, %v573
        %575 = vmatmul.f32.gmra.mxu0 %v288
        %v576 = vpop.f32.mrf.mxu0
        %v577 = vadd.f32 %v464, %v576
        %578 = vdwg.mxu0
        %579 = vmatpush.msra.mxu0 %v320
        %580 = vmatpush.msra.mxu0 %v318
        %581 = vmatpush.msra.mxu0 %v316
        %582 = vmatpush.msra.mxu0 %v314
        %583 = vmatpush.msra.mxu0 %v312
        %584 = vmatpush.msra.mxu0 %v310
        %585 = vmatpush.msra.mxu0 %v308
        %586 = vmatpush.msra.mxu0 %v306
        %587 = vmatpush.msra.mxu0 %v304
        %588 = vmatpush.msra.mxu0 %v302
        %589 = vmatpush.msra.mxu0 %v300
        %590 = vmatpush.msra.mxu0 %v298
        %591 = vmatpush.msra.mxu0 %v296
        %592 = vmatpush.msra.mxu0 %v294
        %593 = vmatpush.msra.mxu0 %v292
        %594 = vmatpush.msra.mxu0 %v290
        %595 = vmatmul.f32.gmra.mxu0 %v225
        %v596 = vpop.f32.mrf.mxu0
        %v597 = vadd.f32 0.0, %v596
        %598 = vmatmul.f32.gmra.mxu0 %v227
        %v599 = vpop.f32.mrf.mxu0
        %v600 = vadd.f32 0.0, %v599
        %601 = vmatmul.f32.gmra.mxu0 %v229
        %v602 = vpop.f32.mrf.mxu0
        %v603 = vadd.f32 0.0, %v602
        %604 = vmatmul.f32.gmra.mxu0 %v231
        %v605 = vpop.f32.mrf.mxu0
        %v606 = vadd.f32 0.0, %v605
        %607 = vmatmul.f32.gmra.mxu0 %v233
        %v608 = vpop.f32.mrf.mxu0
        %v609 = vadd.f32 0.0, %v608
        %610 = vmatmul.f32.gmra.mxu0 %v235
        %v611 = vpop.f32.mrf.mxu0
        %v612 = vadd.f32 0.0, %v611
        %613 = vmatmul.f32.gmra.mxu0 %v237
        %v614 = vpop.f32.mrf.mxu0
        %v615 = vadd.f32 0.0, %v614
        %616 = vmatmul.f32.gmra.mxu0 %v239
        %v617 = vpop.f32.mrf.mxu0
        %v618 = vadd.f32 0.0, %v617
        %619 = vmatmul.f32.gmra.mxu0 %v241
        %v620 = vpop.f32.mrf.mxu0
        %v621 = vadd.f32 0.0, %v620
        %622 = vmatmul.f32.gmra.mxu0 %v243
        %v623 = vpop.f32.mrf.mxu0
        %v624 = vadd.f32 0.0, %v623
        %625 = vmatmul.f32.gmra.mxu0 %v245
        %v626 = vpop.f32.mrf.mxu0
        %v627 = vadd.f32 0.0, %v626
        %628 = vmatmul.f32.gmra.mxu0 %v247
        %v629 = vpop.f32.mrf.mxu0
        %v630 = vadd.f32 0.0, %v629
        %631 = vmatmul.f32.gmra.mxu0 %v249
        %v632 = vpop.f32.mrf.mxu0
        %v633 = vadd.f32 0.0, %v632
        %634 = vmatmul.f32.gmra.mxu0 %v251
        %v635 = vpop.f32.mrf.mxu0
        %v636 = vadd.f32 0.0, %v635
        %637 = vmatmul.f32.gmra.mxu0 %v253
        %v638 = vpop.f32.mrf.mxu0
        %v639 = vadd.f32 0.0, %v638
        %640 = vmatmul.f32.gmra.mxu0 %v255
        %v641 = vpop.f32.mrf.mxu0
        %v642 = vadd.f32 0.0, %v641
        %643 = vmatmul.f32.gmra.mxu0 %v257
        %v644 = vpop.f32.mrf.mxu0
        %v645 = vadd.f32 0.0, %v644
        %646 = vmatmul.f32.gmra.mxu0 %v259
        %v647 = vpop.f32.mrf.mxu0
        %v648 = vadd.f32 0.0, %v647
        %649 = vmatmul.f32.gmra.mxu0 %v261
        %v650 = vpop.f32.mrf.mxu0
        %v651 = vadd.f32 0.0, %v650
        %652 = vmatmul.f32.gmra.mxu0 %v263
        %v653 = vpop.f32.mrf.mxu0
        %v654 = vadd.f32 0.0, %v653
        %655 = vmatmul.f32.gmra.mxu0 %v265
        %v656 = vpop.f32.mrf.mxu0
        %v657 = vadd.f32 0.0, %v656
        %658 = vmatmul.f32.gmra.mxu0 %v267
        %v659 = vpop.f32.mrf.mxu0
        %v660 = vadd.f32 0.0, %v659
        %661 = vmatmul.f32.gmra.mxu0 %v269
        %v662 = vpop.f32.mrf.mxu0
        %v663 = vadd.f32 0.0, %v662
        %664 = vmatmul.f32.gmra.mxu0 %v271
        %v665 = vpop.f32.mrf.mxu0
        %v666 = vadd.f32 0.0, %v665
        %667 = vmatmul.f32.gmra.mxu0 %v273
        %v668 = vpop.f32.mrf.mxu0
        %v669 = vadd.f32 0.0, %v668
        %670 = vmatmul.f32.gmra.mxu0 %v275
        %v671 = vpop.f32.mrf.mxu0
        %v672 = vadd.f32 0.0, %v671
        %673 = vmatmul.f32.gmra.mxu0 %v277
        %v674 = vpop.f32.mrf.mxu0
        %v675 = vadd.f32 0.0, %v674
        %676 = vmatmul.f32.gmra.mxu0 %v279
        %v677 = vpop.f32.mrf.mxu0
        %v678 = vadd.f32 0.0, %v677
        %679 = vmatmul.f32.gmra.mxu0 %v281
        %v680 = vpop.f32.mrf.mxu0
        %v681 = vadd.f32 0.0, %v680
        %682 = vmatmul.f32.gmra.mxu0 %v283
        %v683 = vpop.f32.mrf.mxu0
        %v684 = vadd.f32 0.0, %v683
        %685 = vmatmul.f32.gmra.mxu0 %v285
        %v686 = vpop.f32.mrf.mxu0
        %v687 = vadd.f32 0.0, %v686
        %688 = vmatmul.f32.gmra.mxu0 %v287
        %v689 = vpop.f32.mrf.mxu0
        %v690 = vadd.f32 0.0, %v689
        %691 = vdwg.mxu0
        %692 = vmatpush.msra.mxu0 %v352
        %693 = vmatpush.msra.mxu0 %v350
        %694 = vmatpush.msra.mxu0 %v348
        %695 = vmatpush.msra.mxu0 %v346
        %696 = vmatpush.msra.mxu0 %v344
        %697 = vmatpush.msra.mxu0 %v342
        %698 = vmatpush.msra.mxu0 %v340
        %699 = vmatpush.msra.mxu0 %v338
        %700 = vmatpush.msra.mxu0 %v336
        %701 = vmatpush.msra.mxu0 %v334
        %702 = vmatpush.msra.mxu0 %v332
        %703 = vmatpush.msra.mxu0 %v330
        %704 = vmatpush.msra.mxu0 %v328
        %705 = vmatpush.msra.mxu0 %v326
        %706 = vmatpush.msra.mxu0 %v324
        %707 = vmatpush.msra.mxu0 %v322
        %708 = vmatmul.f32.gmra.mxu0 %v226
        %v709 = vpop.f32.mrf.mxu0
        %v710 = vadd.f32 %v597, %v709
        %711 = vmatmul.f32.gmra.mxu0 %v228
        %v712 = vpop.f32.mrf.mxu0
        %v713 = vadd.f32 %v600, %v712
        %714 = vmatmul.f32.gmra.mxu0 %v230
        %v715 = vpop.f32.mrf.mxu0
        %v716 = vadd.f32 %v603, %v715
        %717 = vmatmul.f32.gmra.mxu0 %v232
        %v718 = vpop.f32.mrf.mxu0
        %v719 = vadd.f32 %v606, %v718
        %720 = vmatmul.f32.gmra.mxu0 %v234
        %v721 = vpop.f32.mrf.mxu0
        %v722 = vadd.f32 %v609, %v721
        %723 = vmatmul.f32.gmra.mxu0 %v236
        %v724 = vpop.f32.mrf.mxu0
        %v725 = vadd.f32 %v612, %v724
        %726 = vmatmul.f32.gmra.mxu0 %v238
        %v727 = vpop.f32.mrf.mxu0
        %v728 = vadd.f32 %v615, %v727
        %729 = vmatmul.f32.gmra.mxu0 %v240
        %v730 = vpop.f32.mrf.mxu0
        %v731 = vadd.f32 %v618, %v730
        %732 = vmatmul.f32.gmra.mxu0 %v242
        %v733 = vpop.f32.mrf.mxu0
        %v734 = vadd.f32 %v621, %v733
        %735 = vmatmul.f32.gmra.mxu0 %v244
        %v736 = vpop.f32.mrf.mxu0
        %v737 = vadd.f32 %v624, %v736
        %738 = vmatmul.f32.gmra.mxu0 %v246
        %v739 = vpop.f32.mrf.mxu0
        %v740 = vadd.f32 %v627, %v739
        %741 = vmatmul.f32.gmra.mxu0 %v248
        %v742 = vpop.f32.mrf.mxu0
        %v743 = vadd.f32 %v630, %v742
        %744 = vmatmul.f32.gmra.mxu0 %v250
        %v745 = vpop.f32.mrf.mxu0
        %v746 = vadd.f32 %v633, %v745
        %747 = vmatmul.f32.gmra.mxu0 %v252
        %v748 = vpop.f32.mrf.mxu0
        %v749 = vadd.f32 %v636, %v748
        %750 = vmatmul.f32.gmra.mxu0 %v254
        %v751 = vpop.f32.mrf.mxu0
        %v752 = vadd.f32 %v639, %v751
        %753 = vmatmul.f32.gmra.mxu0 %v256
        %v754 = vpop.f32.mrf.mxu0
        %v755 = vadd.f32 %v642, %v754
        %756 = vmatmul.f32.gmra.mxu0 %v258
        %v757 = vpop.f32.mrf.mxu0
        %v758 = vadd.f32 %v645, %v757
        %759 = vmatmul.f32.gmra.mxu0 %v260
        %v760 = vpop.f32.mrf.mxu0
        %v761 = vadd.f32 %v648, %v760
        %762 = vmatmul.f32.gmra.mxu0 %v262
        %v763 = vpop.f32.mrf.mxu0
        %v764 = vadd.f32 %v651, %v763
        %765 = vmatmul.f32.gmra.mxu0 %v264
        %v766 = vpop.f32.mrf.mxu0
        %v767 = vadd.f32 %v654, %v766
        %768 = vmatmul.f32.gmra.mxu0 %v266
        %v769 = vpop.f32.mrf.mxu0
        %v770 = vadd.f32 %v657, %v769
        %771 = vmatmul.f32.gmra.mxu0 %v268
        %v772 = vpop.f32.mrf.mxu0
        %v773 = vadd.f32 %v660, %v772
        %774 = vmatmul.f32.gmra.mxu0 %v270
        %v775 = vpop.f32.mrf.mxu0
        %v776 = vadd.f32 %v663, %v775
        %777 = vmatmul.f32.gmra.mxu0 %v272
        %v778 = vpop.f32.mrf.mxu0
        %v779 = vadd.f32 %v666, %v778
        %780 = vmatmul.f32.gmra.mxu0 %v274
        %v781 = vpop.f32.mrf.mxu0
        %v782 = vadd.f32 %v669, %v781
        %783 = vmatmul.f32.gmra.mxu0 %v276
        %v784 = vpop.f32.mrf.mxu0
        %v785 = vadd.f32 %v672, %v784
        %786 = vmatmul.f32.gmra.mxu0 %v278
        %v787 = vpop.f32.mrf.mxu0
        %v788 = vadd.f32 %v675, %v787
        %789 = vmatmul.f32.gmra.mxu0 %v280
        %v790 = vpop.f32.mrf.mxu0
        %v791 = vadd.f32 %v678, %v790
        %792 = vmatmul.f32.gmra.mxu0 %v282
        %v793 = vpop.f32.mrf.mxu0
        %v794 = vadd.f32 %v681, %v793
        %795 = vmatmul.f32.gmra.mxu0 %v284
        %v796 = vpop.f32.mrf.mxu0
        %v797 = vadd.f32 %v684, %v796
        %798 = vmatmul.f32.gmra.mxu0 %v286
        %v799 = vpop.f32.mrf.mxu0
        %v800 = vadd.f32 %v687, %v799
        %801 = vmatmul.f32.gmra.mxu0 %v288
        %v802 = vpop.f32.mrf.mxu0
        %v803 = vadd.f32 %v690, %v802
        %804 = vdwg.mxu0
        %v805 = vld [vmem:[#allocation7] sm:$0x3]
        %v807 = vperm.slane %v805, 0
        %v808 = vperm.slane %v805, 1
        %v811 = vsub.f32 %v807, %v484
        %v812 = vsub.f32 %v808, %v710
        %v813 = vsub.f32 %v807, %v487
        %v814 = vsub.f32 %v808, %v713
        %v815 = vsub.f32 %v807, %v490
        %v816 = vsub.f32 %v808, %v716
        %v817 = vsub.f32 %v807, %v493
        %v818 = vsub.f32 %v808, %v719
        %v819 = vsub.f32 %v807, %v496
        %v820 = vsub.f32 %v808, %v722
        %v821 = vsub.f32 %v807, %v499
        %v822 = vsub.f32 %v808, %v725
        %v823 = vsub.f32 %v807, %v502
        %v824 = vsub.f32 %v808, %v728
        %v825 = vsub.f32 %v807, %v505
        %v826 = vsub.f32 %v808, %v731
        %v827 = vsub.f32 %v807, %v508
        %v828 = vsub.f32 %v808, %v734
        %v829 = vsub.f32 %v807, %v511
        %v830 = vsub.f32 %v808, %v737
        %v831 = vsub.f32 %v807, %v514
        %v832 = vsub.f32 %v808, %v740
        %v833 = vsub.f32 %v807, %v517
        %v834 = vsub.f32 %v808, %v743
        %v835 = vsub.f32 %v807, %v520
        %v836 = vsub.f32 %v808, %v746
        %v837 = vsub.f32 %v807, %v523
        %v838 = vsub.f32 %v808, %v749
        %v839 = vsub.f32 %v807, %v526
        %v840 = vsub.f32 %v808, %v752
        %v841 = vsub.f32 %v807, %v529
        %v842 = vsub.f32 %v808, %v755
        %v843 = vsub.f32 %v807, %v532
        %v844 = vsub.f32 %v808, %v758
        %v845 = vsub.f32 %v807, %v535
        %v846 = vsub.f32 %v808, %v761
        %v847 = vsub.f32 %v807, %v538
        %v848 = vsub.f32 %v808, %v764
        %v849 = vsub.f32 %v807, %v541
        %v850 = vsub.f32 %v808, %v767
        %v851 = vsub.f32 %v807, %v544
        %v852 = vsub.f32 %v808, %v770
        %v853 = vsub.f32 %v807, %v547
        %v854 = vsub.f32 %v808, %v773
        %v855 = vsub.f32 %v807, %v550
        %v856 = vsub.f32 %v808, %v776
        %v857 = vsub.f32 %v807, %v553
        %v858 = vsub.f32 %v808, %v779
        %v859 = vsub.f32 %v807, %v556
        %v860 = vsub.f32 %v808, %v782
        %v861 = vsub.f32 %v807, %v559
        %v862 = vsub.f32 %v808, %v785
        %v863 = vsub.f32 %v807, %v562
        %v864 = vsub.f32 %v808, %v788
        %v865 = vsub.f32 %v807, %v565
        %v866 = vsub.f32 %v808, %v791
        %v867 = vsub.f32 %v807, %v568
        %v868 = vsub.f32 %v808, %v794
        %v869 = vsub.f32 %v807, %v571
        %v870 = vsub.f32 %v808, %v797
        %v871 = vsub.f32 %v807, %v574
        %v872 = vsub.f32 %v808, %v800
        %v873 = vsub.f32 %v807, %v577
        %v874 = vsub.f32 %v808, %v803
        %875 = vst [vmem:[%s222] sm:$0xff] %v811
        %876 = vst [vmem:[%s222 + $0x8] sm:$0xff] %v812
        %877 = vst [vmem:[%s222 + $0x10] sm:$0xff] %v813
        %878 = vst [vmem:[%s222 + $0x18] sm:$0xff] %v814
        %879 = vst [vmem:[%s222 + $0x20] sm:$0xff] %v815
        %880 = vst [vmem:[%s222 + $0x28] sm:$0xff] %v816
        %881 = vst [vmem:[%s222 + $0x30] sm:$0xff] %v817
        %882 = vst [vmem:[%s222 + $0x38] sm:$0xff] %v818
        %883 = vst [vmem:[%s222 + $0x40] sm:$0xff] %v819
        %884 = vst [vmem:[%s222 + $0x48] sm:$0xff] %v820
        %885 = vst [vmem:[%s222 + $0x50] sm:$0xff] %v821
        %886 = vst [vmem:[%s222 + $0x58] sm:$0xff] %v822
        %887 = vst [vmem:[%s222 + $0x60] sm:$0xff] %v823
        %888 = vst [vmem:[%s222 + $0x68] sm:$0xff] %v824
        %889 = vst [vmem:[%s222 + $0x70] sm:$0xff] %v825
        %890 = vst [vmem:[%s222 + $0x78] sm:$0xff] %v826
        %891 = vst [vmem:[%s222 + $0x80] sm:$0xff] %v827
        %892 = vst [vmem:[%s222 + $0x88] sm:$0xff] %v828
        %893 = vst [vmem:[%s222 + $0x90] sm:$0xff] %v829
        %894 = vst [vmem:[%s222 + $0x98] sm:$0xff] %v830
        %895 = vst [vmem:[%s222 + $0xa0] sm:$0xff] %v831
        %896 = vst [vmem:[%s222 + $0xa8] sm:$0xff] %v832
        %897 = vst [vmem:[%s222 + $0xb0] sm:$0xff] %v833
        %898 = vst [vmem:[%s222 + $0xb8] sm:$0xff] %v834
        %899 = vst [vmem:[%s222 + $0xc0] sm:$0xff] %v835
        %900 = vst [vmem:[%s222 + $0xc8] sm:$0xff] %v836
        %901 = vst [vmem:[%s222 + $0xd0] sm:$0xff] %v837
        %902 = vst [vmem:[%s222 + $0xd8] sm:$0xff] %v838
        %903 = vst [vmem:[%s222 + $0xe0] sm:$0xff] %v839
        %904 = vst [vmem:[%s222 + $0xe8] sm:$0xff] %v840
        %905 = vst [vmem:[%s222 + $0xf0] sm:$0xff] %v841
        %906 = vst [vmem:[%s222 + $0xf8] sm:$0xff] %v842
        %907 = vst [vmem:[%s222 + $0x100] sm:$0xff] %v843
        %908 = vst [vmem:[%s222 + $0x108] sm:$0xff] %v844
        %909 = vst [vmem:[%s222 + $0x110] sm:$0xff] %v845
        %910 = vst [vmem:[%s222 + $0x118] sm:$0xff] %v846
        %911 = vst [vmem:[%s222 + $0x120] sm:$0xff] %v847
        %912 = vst [vmem:[%s222 + $0x128] sm:$0xff] %v848
        %913 = vst [vmem:[%s222 + $0x130] sm:$0xff] %v849
        %914 = vst [vmem:[%s222 + $0x138] sm:$0xff] %v850
        %915 = vst [vmem:[%s222 + $0x140] sm:$0xff] %v851
        %916 = vst [vmem:[%s222 + $0x148] sm:$0xff] %v852
        %917 = vst [vmem:[%s222 + $0x150] sm:$0xff] %v853
        %918 = vst [vmem:[%s222 + $0x158] sm:$0xff] %v854
        %919 = vst [vmem:[%s222 + $0x160] sm:$0xff] %v855
        %920 = vst [vmem:[%s222 + $0x168] sm:$0xff] %v856
        %921 = vst [vmem:[%s222 + $0x170] sm:$0xff] %v857
        %922 = vst [vmem:[%s222 + $0x178] sm:$0xff] %v858
        %923 = vst [vmem:[%s222 + $0x180] sm:$0xff] %v859
        %924 = vst [vmem:[%s222 + $0x188] sm:$0xff] %v860
        %925 = vst [vmem:[%s222 + $0x190] sm:$0xff] %v861
        %926 = vst [vmem:[%s222 + $0x198] sm:$0xff] %v862
        %927 = vst [vmem:[%s222 + $0x1a0] sm:$0xff] %v863
        %928 = vst [vmem:[%s222 + $0x1a8] sm:$0xff] %v864
        %929 = vst [vmem:[%s222 + $0x1b0] sm:$0xff] %v865
        %930 = vst [vmem:[%s222 + $0x1b8] sm:$0xff] %v866
        %931 = vst [vmem:[%s222 + $0x1c0] sm:$0xff] %v867
        %932 = vst [vmem:[%s222 + $0x1c8] sm:$0xff] %v868
        %933 = vst [vmem:[%s222 + $0x1d0] sm:$0xff] %v869
        %934 = vst [vmem:[%s222 + $0x1d8] sm:$0xff] %v870
        %935 = vst [vmem:[%s222 + $0x1e0] sm:$0xff] %v871
        %936 = vst [vmem:[%s222 + $0x1e8] sm:$0xff] %v872
        %937 = vst [vmem:[%s222 + $0x1f0] sm:$0xff] %v873
        %938 = vst [vmem:[%s222 + $0x1f8] sm:$0xff] %v874
        %s939 = sand.u32 %s97, 1
        %s940 = scalar_lea.sflag [#allocation4], %s939
        %s941 = sand.u32 %s97, 1
        %s942 = smul.addr %s941, 512
        %s943 = scalar_lea.vmem [#allocation8], %s942
        // Predicated region
        $region45: #{tpu_custom_call.1} parent=31 // pred_check
          %p944 = pneg %p107
        $region46: #{tpu_custom_call.1} parent=31 // pred_check_branch
          %946 = sbr.rel (%p944) target = $region48
        $region47: #{tpu_custom_call.1} parent=31 // pred_region
          %s947 = smul.u32 32, %s21
          %949 = vsyncadd %s940, 0
          %s950 = smul.addr %s947, 2
          %s951 = smul.addr %s950, 8
          %s952 = scalar_lea.hbm %s3, %s951
          %s953 = sshll.u32 %s943, 4
          %s954 = int_to_ptr.vmem [resolvable:$true] %s953
          %s955 = sshll.u32 %s952, 4
          %s956 = int_to_ptr.hbm [resolvable:$true] %s955
          %961 = dma.vmem_to_hbm [thread:$0]  %s954, 8192, %s956, %s940, 256, 256, 16
        $region48: #{tpu_custom_call.1} parent=31 // pred_fallthru
          _
      $region32: #{tpu_custom_call.1} parent=5 // pred_fallthru
        _
      %p962 = scmp.le.s32.totalorder 2, %s16
      // Predicated region
      $region49: #{tpu_custom_call.1} parent=5 // pred_check
        %p963 = pneg %p962
      $region50: #{tpu_custom_call.1} parent=5 // pred_check_branch
        %965 = sbr.rel (%p963) target = $region52
      $region51: #{tpu_custom_call.1} parent=5 // pred_region
        %s966 = ssub.s32 %s16, 2
        // Predicated region
        $region53: #{tpu_custom_call.1} parent=51 // pred_check
          %p967 = pneg %p113
        $region54: #{tpu_custom_call.1} parent=51 // pred_check_branch
          %969 = sbr.rel (%p967) target = $region56
        $region55: #{tpu_custom_call.1} parent=51 // pred_region
          %s970 = sand.u32 %s98, 1
          %s971 = scalar_lea.sflag [#allocation4], %s970
          %s972 = sand.u32 %s98, 1
          %s973 = smul.addr %s972, 512
          %s974 = scalar_lea.vmem [#allocation8], %s973
          %976 = dma.done %s971, 8192
        $region56: #{tpu_custom_call.1} parent=51 // pred_fallthru
          _
      $region52: #{tpu_custom_call.1} parent=5 // pred_fallthru
        _
    $region6: #{tpu_custom_call.1} parent=1 // loop_footer
      %s20 = sadd.s32 1, %s16
    $region7: #{tpu_custom_call.1} parent=1 // loop_footer_branch
      %15 = sbr.rel target = $region3
    $region8: #{tpu_custom_call.1} parent=1 // loop_exit
      _
    %977 = vsyncpa [#allocation3], 1
    %s978 = scalar_lea.sflag [#allocation3], 1
    %979 = vsyncpa %s978, 1
    %980 = vsyncpa [#allocation6], 1
    %981 = vsyncpa [#allocation4], 1
    %s982 = scalar_lea.sflag [#allocation4], 1
    %983 = vsyncpa %s982, 1

</llo_original>
